<compile_context>
chip_gen: v7x
topology: tpu7x:2x2x1
jax: 0.10.0
libtpu: 0.0.40
codegen_flags: <defaults>
</compile_context>

<pallas_src>
import jax
import jax.numpy as jnp
from jax.experimental import pallas as pl
from jax.experimental.pallas import tpu as pltpu


# Inter-kernel activation dtype stored in HBM.  bf16 halves memory traffic (the model is
# HBM-bound); all in-kernel elementwise math stays f32 so this is safe on v5e/v6e/v7x.
ACT_DTYPE = jnp.bfloat16


# ----------------------------------------------------------------------------------
# Fused MLP kernel factory (transposed / lane-dense layout).
#   refs = (x_0..x_{k-1}, w1t_0..w1t_{k-1}, b1, w2t, b2, w3t, b3, [gamma, beta], [res], out)
# Computes, with X = concat(x_0..x_{k-1}) along channels (realized as summed dots):
#   H1 = SiLU(W1^T X + b1);  H2 = SiLU(W2^T H1 + b2);  Y = W3^T H2 + b3
#   -> optional LayerNorm over channels (axis 0) -> optional residual add.
# All dots feed the MXU with bf16 operands and f32 accumulation.
# ----------------------------------------------------------------------------------
def _make_mlp_kernel(n_inputs: int, apply_norm: bool, has_residual: bool):
    def kernel(*refs):
        i = 0
        xs = [refs[i + k][...] for k in range(n_inputs)]
        i += n_inputs
        w1s = [refs[i + k][...] for k in range(n_inputs)]
        i += n_inputs
        b1 = refs[i][...]; w2 = refs[i + 1][...]; b2 = refs[i + 2][...]
        w3 = refs[i + 3][...]; b3 = refs[i + 4][...]
        i += 5
        if apply_norm:
            gamma = refs[i][...]; beta = refs[i + 1][...]
            i += 2
        if has_residual:
            res = refs[i][...]
            i += 1
        o_ref = refs[i]

        # concat fused as sum of per-piece matmuls against W1^T slices (no lane shuffle)
        h = b1.astype(jnp.float32)
        for x, w in zip(xs, w1s):
            h = h + jnp.dot(w.astype(jnp.bfloat16), x.astype(jnp.bfloat16),
                            preferred_element_type=jnp.float32)
        h = h * jax.nn.sigmoid(h)                                     # SiLU
        h = jnp.dot(w2.astype(jnp.bfloat16), h.astype(jnp.bfloat16),
                    preferred_element_type=jnp.float32) + b2
        h = h * jax.nn.sigmoid(h)                                     # SiLU
        y = jnp.dot(w3.astype(jnp.bfloat16), h.astype(jnp.bfloat16),
                    preferred_element_type=jnp.float32) + b3
        if apply_norm:                        # torch.nn.LayerNorm(out_dim), eps=1e-5 (2-pass)
            mu = jnp.mean(y, axis=0, keepdims=True)
            d = y - mu
            var = jnp.mean(d * d, axis=0, keepdims=True)
            y = d * jax.lax.rsqrt(var + 1e-5)
            y = y * gamma + beta
        if has_residual:
            y = y + res.astype(jnp.float32)
        o_ref[...] = y.astype(o_ref.dtype)

    return kernel


def _col_tile(n: int, max_tile: int = 4096) -> int:
    """Lane (row) tile size.

    Multiple of 128 (lane-dense stores), at least 2 grid steps whenever n > 128 so the
    'parallel' grid axis can use both v7x TensorCores, capped at `max_tile` rows
    (32ch * 4096 * 4B = 0.5 MiB/block -> a few MiB double-buffered, fits every gen's
    default scoped VMEM without raising vmem_limit_bytes)."""
    if n <= 128:
        return n                               # single full-extent block
    half = ((-(-n // 2) + 127) // 128) * 128   # round_up(ceil(n/2), 128)
    return max(128, min(max_tile, half))


def fused_mlp(inputs, p, *, apply_norm=True, residual=None,
              out_dtype=ACT_DTYPE, max_tile=4096):
    """Fused (concat ->) MLP (-> LayerNorm) (-> +residual) in [channels, rows] layout.

    `inputs` is an array or list of arrays, all (d_i, rows); their channel-concat is the
    logical MLP input.  `residual`, if given, is (out_dim, rows) and added to the output.
    """
    if not isinstance(inputs, (list, tuple)):
        inputs = [inputs]
    n = inputs[0].shape[1]                       # rows -> lanes
    in_dims = [x.shape[0] for x in inputs]
    hid = p["w1t"].shape[0]
    out_dim = p["w3t"].shape[0]
    assert sum(in_dims) == p["w1t"].shape[1]

    # Split W1^T along its contracting dim so the concat happens in-kernel as summed dots.
    w1_splits, off = [], 0
    for d in in_dims:
        w1_splits.append(p["w1t"][:, off:off + d])
        off += d

    tile = _col_tile(n, max_tile)
    grid = (pl.cdiv(n, tile),)

    col_spec = lambda c: pl.BlockSpec((c, tile), lambda i: (0, i))   # streamed over rows
    full = lambda i: (0, 0)                                          # resident weights

    in_specs = [col_spec(d) for d in in_dims]
    in_specs += [pl.BlockSpec((hid, d), full) for d in in_dims]
    in_specs += [
        pl.BlockSpec((hid, 1), full),
        pl.BlockSpec((hid, hid), full),
        pl.BlockSpec((hid, 1), full),
        pl.BlockSpec((out_dim, hid), full),
        pl.BlockSpec((out_dim, 1), full),
    ]
    args = list(inputs) + w1_splits + [p["b1"], p["w2t"], p["b2"], p["w3t"], p["b3"]]
    if apply_norm:
        in_specs += [pl.BlockSpec((out_dim, 1), full), pl.BlockSpec((out_dim, 1), full)]
        args += [p["gamma"], p["beta"]]
    if residual is not None:
        in_specs.append(col_spec(out_dim))
        args.append(residual)

    kernel = _make_mlp_kernel(len(inputs), apply_norm, residual is not None)
    return pl.pallas_call(
        kernel,
        out_shape=jax.ShapeDtypeStruct((out_dim, n), out_dtype),
        grid=grid,
        in_specs=in_specs,
        out_specs=pl.BlockSpec((out_dim, tile), lambda i: (0, i)),
        compiler_params=pltpu.CompilerParams(dimension_semantics=("parallel",)),
    )(*args)


# ----------------------------------------------------------------------------------
# Graph message-passing block (edge MLP + residual, scatter-sum, node MLP + residual).
# ----------------------------------------------------------------------------------
def graph_block(x, edge_index, edge_attr, blk_params):
    """x: (node_dim, N), edge_attr: (edge_dim, E); returns updated (x, edge_attr)."""
    src, dst = edge_index
    # TODO(synk): the x[:, src]/x[:, dst] gather and the scatter-add are data-dependent
    # indexing and stay in plain JAX; moving them in-kernel needs PrefetchScalarGridSpec
    # index prefetch + a grouped (edges pre-sorted by dst) accumulate pattern.
    x_src = jnp.take(x, src, axis=1)
    x_dst = jnp.take(x, dst, axis=1)
    e_new = fused_mlp([x_src, x_dst, edge_attr], blk_params["edge_mlp"],
                      apply_norm=True, residual=edge_attr)
    agg = jnp.zeros((e_new.shape[0], x.shape[1]), e_new.dtype).at[:, dst].add(e_new)
    x_new = fused_mlp([x, agg], blk_params["node_mlp"],
                      apply_norm=True, residual=x)
    return x_new, e_new


# ----------------------------------------------------------------------------------
# Parameter initialization (deterministic, synthetic).  Weights stored pre-transposed
# (W^T) for the [channels, rows] kernel layout; biases/gamma/beta are column vectors.
# ----------------------------------------------------------------------------------
def init_mlp(key, in_dim, hid, out_dim):
    k1, k2, k3 = jax.random.split(key, 3)
    s1, s2, s3 = 1.0 / jnp.sqrt(in_dim), 1.0 / jnp.sqrt(hid), 1.0 / jnp.sqrt(hid)
    return {
        "w1t": jax.random.normal(k1, (hid, in_dim), jnp.float32) * s1,
        "b1": jnp.zeros((hid, 1), jnp.float32),
        "w2t": jax.random.normal(k2, (hid, hid), jnp.float32) * s2,
        "b2": jnp.zeros((hid, 1), jnp.float32),
        "w3t": jax.random.normal(k3, (out_dim, hid), jnp.float32) * s3,
        "b3": jnp.zeros((out_dim, 1), jnp.float32),
        "gamma": jnp.ones((out_dim, 1), jnp.float32),
        "beta": jnp.zeros((out_dim, 1), jnp.float32),
    }


def init_block(key, node_dim, edge_dim, hid_edge, hid_node):
    ke, kn = jax.random.split(key)
    return {
        "edge_mlp": init_mlp(ke, 2 * node_dim + edge_dim, hid_edge, edge_dim),
        "node_mlp": init_mlp(kn, node_dim + edge_dim, hid_node, node_dim),
    }


def init_params(key, cfg):
    keys = jax.random.split(key, 16)
    nd, ed = cfg["node_dim"], cfg["edge_dim"]
    hn, he = cfg["hidden_dim_processor_node"], cfg["hidden_dim_processor_edge"]
    return {
        # Encoder
        "enc_node_encoder": init_mlp(keys[0], cfg["input_dim"], hn, nd),
        "enc_edge_encoder": init_mlp(keys[1], 2, he, ed),
        "enc_latent_edge_encoder": init_mlp(keys[2], 2, he, ed),
        "enc_block": init_block(keys[3], nd, ed, he, hn),
        # Processor
        "proc_blocks": [init_block(keys[4 + b], nd, ed, he, hn)
                        for b in range(cfg["num_blocks"])],
        # Decoder
        "dec_edge_encoder": init_mlp(keys[10], 2, he, ed),
        "dec_block": init_block(keys[11], nd, ed, he, hn),
        "node_decoder": init_mlp(keys[12], nd, cfg["hidden_dim_decoder"],
                                 cfg["output_dim"]),
    }


# ----------------------------------------------------------------------------------
# Deterministic synthetic graph structure (lat/lon grid <-> graph nodes).
# Raw edge attributes stored as (2, E) to match the [channels, rows] layout.
# ----------------------------------------------------------------------------------
def build_graphs(cfg):
    n_ll, n_g = cfg["N_latlon"], cfg["N_graph"]
    ll2g = jnp.arange(n_ll, dtype=jnp.int32) % n_g          # lat_lons_to_graph_map

    # Encoder bipartite graph: latlon i -> graph node map[i]; node order [latlon; graph]
    enc_src = jnp.arange(n_ll, dtype=jnp.int32)
    enc_dst = n_ll + ll2g
    dist = (jnp.arange(n_ll, dtype=jnp.float32) + 1.0) / n_ll        # synthetic distances
    enc_edge_attr_t = jnp.stack([jnp.sin(dist), jnp.cos(dist)], axis=0)      # (2, E)

    # Latent (processor) graph: ring over graph nodes, both directions
    g = jnp.arange(n_g, dtype=jnp.int32)
    lat_src = jnp.concatenate([g, g])
    lat_dst = jnp.concatenate([(g + 1) % n_g, (g - 1) % n_g])
    ldist = (jnp.arange(2 * n_g, dtype=jnp.float32) + 1.0) / (2 * n_g)
    lat_edge_attr_t = jnp.stack([jnp.sin(ldist), jnp.cos(ldist)], axis=0)    # (2, 2*n_g)

    # Decoder bipartite graph: graph node map[i] -> latlon i; node order [graph; latlon]
    dec_src = ll2g
    dec_dst = n_g + jnp.arange(n_ll, dtype=jnp.int32)
    dec_edge_attr_t = jnp.stack([jnp.cos(dist), jnp.sin(dist)], axis=0)      # (2, E)

    return {
        "enc_src": enc_src, "enc_dst": enc_dst, "enc_edge_attr_t": enc_edge_attr_t,
        "lat_src": lat_src, "lat_dst": lat_dst, "lat_edge_attr_t": lat_edge_attr_t,
        "dec_src": dec_src, "dec_dst": dec_dst, "dec_edge_attr_t": dec_edge_attr_t,
    }


def _batch_edges(src, dst, n_per_graph, batch):
    offs = (jnp.arange(batch, dtype=jnp.int32) * n_per_graph)[:, None]
    return (src[None, :] + offs).reshape(-1), (dst[None, :] + offs).reshape(-1)


# ----------------------------------------------------------------------------------
# Forward pass: GraphWeatherForecaster.forward
# ----------------------------------------------------------------------------------
def forecaster_forward(features, params, graphs, cfg):
    B, n_ll, in_dim = features.shape
    n_g, nd = cfg["N_graph"], cfg["node_dim"]
    out_dim = cfg["output_dim"]

    # ---------------- Encoder ----------------
    flat_t = features.reshape(B * n_ll, in_dim).T                      # (in_dim, B*n_ll)
    ll_enc = fused_mlp(flat_t, params["enc_node_encoder"])             # (nd, B*n_ll)
    # node order per batch element: [latlon rows ; graph rows]
    # TODO(synk): the zero graph-node rows are still materialized via a concat; could be
    # removed by writing ll_enc into a preallocated buffer via input_output_aliases.
    nodes = jnp.concatenate(
        [ll_enc.reshape(nd, B, n_ll),
         jnp.zeros((nd, B, n_g), ll_enc.dtype)], axis=2).reshape(nd, B * (n_ll + n_g))

    e_attr = fused_mlp(graphs["enc_edge_attr_t"], params["enc_edge_encoder"])
    # TODO(synk): batch tiling of encoded edge attrs still materializes (B-1) copies;
    # a batch-periodic index_map in fused_mlp would remove it.
    e_attr_b = jnp.tile(e_attr, (1, B))
    src, dst = _batch_edges(graphs["enc_src"], graphs["enc_dst"], n_ll + n_g, B)
    nodes, _ = graph_block(nodes, (src, dst), e_attr_b, params["enc_block"])
    x = nodes.reshape(nd, B, n_ll + n_g)[:, :, n_ll:].reshape(nd, B * n_g)

    lat_attr = fused_mlp(graphs["lat_edge_attr_t"], params["enc_latent_edge_encoder"])
    lat_attr_b = jnp.tile(lat_attr, (1, B))
    lsrc, ldst = _batch_edges(graphs["lat_src"], graphs["lat_dst"], n_g, B)

    # ---------------- Processor ----------------
    e = lat_attr_b
    for blk in params["proc_blocks"]:
        x, e = graph_block(x, (lsrc, ldst), e, blk)

    # ---------------- Decoder ----------------
    dec_attr = fused_mlp(graphs["dec_edge_attr_t"], params["dec_edge_encoder"])
    dec_attr_b = jnp.tile(dec_attr, (1, B))
    dnodes = jnp.concatenate(
        [x.reshape(nd, B, n_g),
         jnp.zeros((nd, B, n_ll), x.dtype)], axis=2).reshape(nd, B * (n_g + n_ll))
    dsrc, ddst = _batch_edges(graphs["dec_src"], graphs["dec_dst"], n_g + n_ll, B)
    dnodes, _ = graph_block(dnodes, (dsrc, ddst), dec_attr_b, params["dec_block"])
    ll_out = dnodes.reshape(nd, B, n_g + n_ll)[:, :, n_g:].reshape(nd, B * n_ll)

    # Final node decoder MLP; "+ start_features" is fused in as a residual.  When
    # predict_delta=False the reference adds zeros, so the add is skipped entirely.
    res = None
    if cfg["predict_delta"]:
        start = features[..., cfg["target_variables"]]                 # (B, n_ll, out_dim)
        res = start.reshape(B * n_ll, out_dim).T                       # f32 (out_dim, rows)
    out_t = fused_mlp(ll_out, params["node_decoder"], apply_norm=False,
                      residual=res, out_dtype=jnp.float32)             # (out_dim, B*n_ll)
    return out_t.T.reshape(B, n_ll, out_dim)


# ----------------------------------------------------------------------------------
if __name__ == "__main__":
    cfg = {
        "N_latlon": 16,
        "N_graph": 8,
        "feature_dim": 8,
        "aux_dim": 4,
        "input_dim": 12,            # feature_dim + aux_dim
        "output_dim": 8,
        "node_dim": 32,
        "edge_dim": 32,
        "num_blocks": 2,
        "hidden_dim_processor_node": 32,
        "hidden_dim_processor_edge": 32,
        "hidden_dim_decoder": 16,
        "predict_delta": False,
        "target_variables": jnp.arange(8, dtype=jnp.int32),  # default: range(output_dim)
    }

    key = jax.random.PRNGKey(0)
    k_params, k_feat = jax.random.split(key)
    params = init_params(k_params, cfg)
    graphs = build_graphs(cfg)

    B = 2
    features = jax.random.normal(
        k_feat, (B, cfg["N_latlon"], cfg["input_dim"]), jnp.float32)

    out = forecaster_forward(features, params, graphs, cfg)
    out = jax.block_until_ready(out)
    assert out.shape == (B, cfg["N_latlon"], cfg["output_dim"])
    assert bool(jnp.all(jnp.isfinite(out)))
    print("KERNEL_OK")
</pallas_src>

<mosaic_0001>
module attributes {stable_mosaic.version = 11 : i64} {
  func.func @kernel(%arg0: i32, %arg1: memref<12x32xf32, #tpu.memory_space<vmem>>, %arg2: memref<32x12xf32, #tpu.memory_space<vmem>>, %arg3: memref<32x1xf32, #tpu.memory_space<vmem>>, %arg4: memref<32x32xf32, #tpu.memory_space<vmem>>, %arg5: memref<32x1xf32, #tpu.memory_space<vmem>>, %arg6: memref<32x32xf32, #tpu.memory_space<vmem>>, %arg7: memref<32x1xf32, #tpu.memory_space<vmem>>, %arg8: memref<32x1xf32, #tpu.memory_space<vmem>>, %arg9: memref<32x1xf32, #tpu.memory_space<vmem>>, %arg10: memref<32x32xbf16, #tpu.memory_space<vmem>>) attributes {dimension_semantics = [#tpu.dimension_semantics<parallel>], iteration_bounds = array<i64: 1>, scalar_prefetch = 0 : i64, scratch_operands = 0 : i64, tpu.core_type = #tpu.core_type<tc>, window_params = [{transform_indices = @transform_0, window_bounds = array<i64: 12, 32>}, {pipeline_mode = #tpu.pipeline_mode<synchronous>, transform_indices = @transform_1, window_bounds = array<i64: 32, 12>}, {pipeline_mode = #tpu.pipeline_mode<synchronous>, transform_indices = @transform_2, window_bounds = array<i64: 32, 1>}, {pipeline_mode = #tpu.pipeline_mode<synchronous>, transform_indices = @transform_3, window_bounds = array<i64: 32, 32>}, {pipeline_mode = #tpu.pipeline_mode<synchronous>, transform_indices = @transform_4, window_bounds = array<i64: 32, 1>}, {pipeline_mode = #tpu.pipeline_mode<synchronous>, transform_indices = @transform_5, window_bounds = array<i64: 32, 32>}, {pipeline_mode = #tpu.pipeline_mode<synchronous>, transform_indices = @transform_6, window_bounds = array<i64: 32, 1>}, {pipeline_mode = #tpu.pipeline_mode<synchronous>, transform_indices = @transform_7, window_bounds = array<i64: 32, 1>}, {pipeline_mode = #tpu.pipeline_mode<synchronous>, transform_indices = @transform_8, window_bounds = array<i64: 32, 1>}, {transform_indices = @transform_9, window_bounds = array<i64: 32, 32>}]} {
    %c0 = arith.constant 0 : index
    %c0_0 = arith.constant 0 : index
    %0 = vector.load %arg1[%c0, %c0_0] : memref<12x32xf32, #tpu.memory_space<vmem>>, vector<12x32xf32>
    %c0_1 = arith.constant 0 : index
    %c0_2 = arith.constant 0 : index
    %1 = vector.load %arg2[%c0_1, %c0_2] : memref<32x12xf32, #tpu.memory_space<vmem>>, vector<32x12xf32>
    %c0_3 = arith.constant 0 : index
    %c0_4 = arith.constant 0 : index
    %2 = vector.load %arg3[%c0_3, %c0_4] : memref<32x1xf32, #tpu.memory_space<vmem>>, vector<32x1xf32>
    %c0_5 = arith.constant 0 : index
    %c0_6 = arith.constant 0 : index
    %3 = vector.load %arg4[%c0_5, %c0_6] : memref<32x32xf32, #tpu.memory_space<vmem>>, vector<32x32xf32>
    %c0_7 = arith.constant 0 : index
    %c0_8 = arith.constant 0 : index
    %4 = vector.load %arg5[%c0_7, %c0_8] : memref<32x1xf32, #tpu.memory_space<vmem>>, vector<32x1xf32>
    %c0_9 = arith.constant 0 : index
    %c0_10 = arith.constant 0 : index
    %5 = vector.load %arg6[%c0_9, %c0_10] : memref<32x32xf32, #tpu.memory_space<vmem>>, vector<32x32xf32>
    %c0_11 = arith.constant 0 : index
    %c0_12 = arith.constant 0 : index
    %6 = vector.load %arg7[%c0_11, %c0_12] : memref<32x1xf32, #tpu.memory_space<vmem>>, vector<32x1xf32>
    %c0_13 = arith.constant 0 : index
    %c0_14 = arith.constant 0 : index
    %7 = vector.load %arg8[%c0_13, %c0_14] : memref<32x1xf32, #tpu.memory_space<vmem>>, vector<32x1xf32>
    %c0_15 = arith.constant 0 : index
    %c0_16 = arith.constant 0 : index
    %8 = vector.load %arg9[%c0_15, %c0_16] : memref<32x1xf32, #tpu.memory_space<vmem>>, vector<32x1xf32>
    %9 = arith.truncf %1 : vector<32x12xf32> to vector<32x12xbf16>
    %10 = arith.truncf %0 : vector<12x32xf32> to vector<12x32xbf16>
    %cst = arith.constant dense<0.000000e+00> : vector<32x32xf32>
    %11 = tpu.matmul %9, %10, %cst {dimension_numbers = #tpu.dot_dimension_numbers<[1], [0], [0], [1], [0, 0, 1, 1], [], []>} : vector<32x12xbf16>, vector<12x32xbf16>, vector<32x32xf32> -> vector<32x32xf32>
    %12 = vector.broadcast %2 : vector<32x1xf32> to vector<32x32xf32>
    %13 = arith.addf %12, %11 : vector<32x32xf32>
    %14 = arith.negf %13 : vector<32x32xf32>
    %15 = math.exp %14 : vector<32x32xf32>
    %cst_17 = arith.constant 1.000000e+00 : f32
    %16 = vector.broadcast %cst_17 : f32 to vector<32x32xf32>
    %17 = arith.addf %16, %15 : vector<32x32xf32>
    %18 = arith.divf %16, %17 : vector<32x32xf32>
    %19 = arith.mulf %13, %18 : vector<32x32xf32>
    %20 = arith.truncf %3 : vector<32x32xf32> to vector<32x32xbf16>
    %21 = arith.truncf %19 : vector<32x32xf32> to vector<32x32xbf16>
    %cst_18 = arith.constant dense<0.000000e+00> : vector<32x32xf32>
    %22 = tpu.matmul %20, %21, %cst_18 {dimension_numbers = #tpu.dot_dimension_numbers<[1], [0], [0], [1], [0, 0, 1, 1], [], []>} : vector<32x32xbf16>, vector<32x32xbf16>, vector<32x32xf32> -> vector<32x32xf32>
    %23 = vector.broadcast %4 : vector<32x1xf32> to vector<32x32xf32>
    %24 = arith.addf %22, %23 : vector<32x32xf32>
    %25 = arith.negf %24 : vector<32x32xf32>
    %26 = math.exp %25 : vector<32x32xf32>
    %cst_19 = arith.constant 1.000000e+00 : f32
    %27 = vector.broadcast %cst_19 : f32 to vector<32x32xf32>
    %28 = arith.addf %27, %26 : vector<32x32xf32>
    %29 = arith.divf %27, %28 : vector<32x32xf32>
    %30 = arith.mulf %24, %29 : vector<32x32xf32>
    %31 = arith.truncf %5 : vector<32x32xf32> to vector<32x32xbf16>
    %32 = arith.truncf %30 : vector<32x32xf32> to vector<32x32xbf16>
    %cst_20 = arith.constant dense<0.000000e+00> : vector<32x32xf32>
    %33 = tpu.matmul %31, %32, %cst_20 {dimension_numbers = #tpu.dot_dimension_numbers<[1], [0], [0], [1], [0, 0, 1, 1], [], []>} : vector<32x32xbf16>, vector<32x32xbf16>, vector<32x32xf32> -> vector<32x32xf32>
    %34 = vector.broadcast %6 : vector<32x1xf32> to vector<32x32xf32>
    %35 = arith.addf %33, %34 : vector<32x32xf32>
    %cst_21 = arith.constant dense<0.000000e+00> : vector<32xf32>
    %36 = vector.multi_reduction <add>, %35, %cst_21 [0] : vector<32x32xf32> to vector<32xf32>
    %37 = vector.shape_cast %36 : vector<32xf32> to vector<1x32xf32>
    %cst_22 = arith.constant 3.200000e+01 : f32
    %38 = vector.broadcast %cst_22 : f32 to vector<1x32xf32>
    %39 = arith.divf %37, %38 : vector<1x32xf32>
    %40 = vector.broadcast %39 : vector<1x32xf32> to vector<32x32xf32>
    %41 = arith.subf %35, %40 : vector<32x32xf32>
    %42 = arith.mulf %41, %41 : vector<32x32xf32>
    %cst_23 = arith.constant dense<0.000000e+00> : vector<32xf32>
    %43 = vector.multi_reduction <add>, %42, %cst_23 [0] : vector<32x32xf32> to vector<32xf32>
    %44 = vector.shape_cast %43 : vector<32xf32> to vector<1x32xf32>
    %cst_24 = arith.constant 3.200000e+01 : f32
    %45 = vector.broadcast %cst_24 : f32 to vector<1x32xf32>
    %46 = arith.divf %44, %45 : vector<1x32xf32>
    %cst_25 = arith.constant 9.99999974E-6 : f32
    %47 = vector.broadcast %cst_25 : f32 to vector<1x32xf32>
    %48 = arith.addf %46, %47 : vector<1x32xf32>
    %49 = math.rsqrt %48 : vector<1x32xf32>
    %50 = vector.broadcast %49 : vector<1x32xf32> to vector<32x32xf32>
    %51 = arith.mulf %41, %50 : vector<32x32xf32>
    %52 = vector.broadcast %7 : vector<32x1xf32> to vector<32x32xf32>
    %53 = arith.mulf %51, %52 : vector<32x32xf32>
    %54 = vector.broadcast %8 : vector<32x1xf32> to vector<32x32xf32>
    %55 = arith.addf %53, %54 : vector<32x32xf32>
    %56 = arith.truncf %55 : vector<32x32xf32> to vector<32x32xbf16>
    %c0_26 = arith.constant 0 : index
    %c0_27 = arith.constant 0 : index
    %57 = vector.load %arg10[%c0_26, %c0_27] : memref<32x32xbf16, #tpu.memory_space<vmem>>, vector<32x32xbf16>
    tpu.vector_store %arg10[%c0_26, %c0_27], %56 {strides = array<i32>} : memref<32x32xbf16, #tpu.memory_space<vmem>>, vector<32x32xbf16>,
    return
  }
  func.func @transform_0(%arg0: i32) -> (i32, i32) {
    %c0_i32 = arith.constant 0 : i32
    %c0_i32_0 = arith.constant 0 : i32
    return %c0_i32, %arg0 : i32, i32
  }
  func.func @transform_1(%arg0: i32) -> (i32, i32) {
    %c0_i32 = arith.constant 0 : i32
    %c0_i32_0 = arith.constant 0 : i32
    %c0_i32_1 = arith.constant 0 : i32
    return %c0_i32, %c0_i32_0 : i32, i32
  }
  func.func @transform_2(%arg0: i32) -> (i32, i32) {
    %c0_i32 = arith.constant 0 : i32
    %c0_i32_0 = arith.constant 0 : i32
    %c0_i32_1 = arith.constant 0 : i32
    return %c0_i32, %c0_i32_0 : i32, i32
  }
  func.func @transform_3(%arg0: i32) -> (i32, i32) {
    %c0_i32 = arith.constant 0 : i32
    %c0_i32_0 = arith.constant 0 : i32
    %c0_i32_1 = arith.constant 0 : i32
    return %c0_i32, %c0_i32_0 : i32, i32
  }
  func.func @transform_4(%arg0: i32) -> (i32, i32) {
    %c0_i32 = arith.constant 0 : i32
    %c0_i32_0 = arith.constant 0 : i32
    %c0_i32_1 = arith.constant 0 : i32
    return %c0_i32, %c0_i32_0 : i32, i32
  }
  func.func @transform_5(%arg0: i32) -> (i32, i32) {
    %c0_i32 = arith.constant 0 : i32
    %c0_i32_0 = arith.constant 0 : i32
    %c0_i32_1 = arith.constant 0 : i32
    return %c0_i32, %c0_i32_0 : i32, i32
  }
  func.func @transform_6(%arg0: i32) -> (i32, i32) {
    %c0_i32 = arith.constant 0 : i32
    %c0_i32_0 = arith.constant 0 : i32
    %c0_i32_1 = arith.constant 0 : i32
    return %c0_i32, %c0_i32_0 : i32, i32
  }
  func.func @transform_7(%arg0: i32) -> (i32, i32) {
    %c0_i32 = arith.constant 0 : i32
    %c0_i32_0 = arith.constant 0 : i32
    %c0_i32_1 = arith.constant 0 : i32
    return %c0_i32, %c0_i32_0 : i32, i32
  }
  func.func @transform_8(%arg0: i32) -> (i32, i32) {
    %c0_i32 = arith.constant 0 : i32
    %c0_i32_0 = arith.constant 0 : i32
    %c0_i32_1 = arith.constant 0 : i32
    return %c0_i32, %c0_i32_0 : i32, i32
  }
  func.func @transform_9(%arg0: i32) -> (i32, i32) {
    %c0_i32 = arith.constant 0 : i32
    %c0_i32_0 = arith.constant 0 : i32
    return %c0_i32, %arg0 : i32, i32
  }
}

</mosaic_0001>

<llo_original>
// kernel: tpu_custom_call.1
$region0: #{tpu_custom_call.1}
  #allocation0 [shape = 'u32[]', space=smem, size = 0x4, offset = 0x4, fixed_abs, tag = 'smem constant byte address 0x4 - core index']
  #allocation1 [shape = 'u32[144,128]{1,0:T(1,128)}', space=vmem, size = 0x12000, scoped, tag = 'internal scratch']
  %s0 = inlined_call_operand.vmem [shape: f32[12,32], index: 0, kind: input, shape index: {}]
  %s1 = inlined_call_operand.vmem [shape: f32[32,12], index: 1, kind: input, shape index: {}]
  %s2 = inlined_call_operand.vmem [shape: f32[32,1], index: 2, kind: input, shape index: {}]
  %s3 = inlined_call_operand.vmem [shape: f32[32,32], index: 3, kind: input, shape index: {}]
  %s4 = inlined_call_operand.vmem [shape: f32[32,1], index: 4, kind: input, shape index: {}]
  %s5 = inlined_call_operand.vmem [shape: f32[32,32], index: 5, kind: input, shape index: {}]
  %s6 = inlined_call_operand.vmem [shape: f32[32,1], index: 6, kind: input, shape index: {}]
  %s7 = inlined_call_operand.vmem [shape: f32[32,1], index: 7, kind: input, shape index: {}]
  %s8 = inlined_call_operand.vmem [shape: f32[32,1], index: 8, kind: input, shape index: {}]
  %s9 = inlined_call_operand.hbm [shape: bf16[32,32], index: 9, kind: output, shape index: {}]
  %s10 = sld [smem:[#allocation0]]
  $region46: #{tpu_custom_call.1} parent=0
    _
  %s12 = ssub.s32 1, %s10
  %s13 = scalar_select 0, %s12, %s10
  $region1: #{tpu_custom_call.1} parent=0
    #allocation2 [shape = 'u8[8192]{0}', space=vmem, size = 0x2000, scoped, tag = 'output window, operand 0, single buffered']
    #allocation3 [shape = 's32[1]{0}', space=sflag, size = 0x4, scoped, tag = 'scoped memory for tpu_custom_call.1']
    %14 = vsyncpa [#allocation3], 0
    // Predicated region
    $region2: #{tpu_custom_call.1} parent=1 // pred_check
      _
    $region3: #{tpu_custom_call.1} parent=1 // pred_check_branch
      %16 = sbr.rel (0) target = $region5
    $region4: #{tpu_custom_call.1} parent=1 // pred_region
      _
    $region5: #{tpu_custom_call.1} parent=1 // pred_fallthru
      _
    // Predicated region
    $region6: #{tpu_custom_call.1} parent=1 // pred_check
      _
    $region7: #{tpu_custom_call.1} parent=1 // pred_check_branch
      %18 = sbr.rel (0) target = $region9
    $region8: #{tpu_custom_call.1} parent=1 // pred_region
      _
    $region9: #{tpu_custom_call.1} parent=1 // pred_fallthru
      _
    // Predicated region
    $region10: #{tpu_custom_call.1} parent=1 // pred_check
      _
    $region11: #{tpu_custom_call.1} parent=1 // pred_check_branch
      %20 = sbr.rel (0) target = $region13
    $region12: #{tpu_custom_call.1} parent=1 // pred_region
      _
    $region13: #{tpu_custom_call.1} parent=1 // pred_fallthru
      _
    // Predicated region
    $region14: #{tpu_custom_call.1} parent=1 // pred_check
      _
    $region15: #{tpu_custom_call.1} parent=1 // pred_check_branch
      %22 = sbr.rel (0) target = $region17
    $region16: #{tpu_custom_call.1} parent=1 // pred_region
      _
    $region17: #{tpu_custom_call.1} parent=1 // pred_fallthru
      _
    // Predicated region
    $region18: #{tpu_custom_call.1} parent=1 // pred_check
      _
    $region19: #{tpu_custom_call.1} parent=1 // pred_check_branch
      %24 = sbr.rel (0) target = $region21
    $region20: #{tpu_custom_call.1} parent=1 // pred_region
      _
    $region21: #{tpu_custom_call.1} parent=1 // pred_fallthru
      _
    // Predicated region
    $region22: #{tpu_custom_call.1} parent=1 // pred_check
      _
    $region23: #{tpu_custom_call.1} parent=1 // pred_check_branch
      %26 = sbr.rel (0) target = $region25
    $region24: #{tpu_custom_call.1} parent=1 // pred_region
      _
    $region25: #{tpu_custom_call.1} parent=1 // pred_fallthru
      _
    // Predicated region
    $region26: #{tpu_custom_call.1} parent=1 // pred_check
      _
    $region27: #{tpu_custom_call.1} parent=1 // pred_check_branch
      %28 = sbr.rel (0) target = $region29
    $region28: #{tpu_custom_call.1} parent=1 // pred_region
      _
    $region29: #{tpu_custom_call.1} parent=1 // pred_fallthru
      _
    // Predicated region
    $region30: #{tpu_custom_call.1} parent=1 // pred_check
      _
    $region31: #{tpu_custom_call.1} parent=1 // pred_check_branch
      %30 = sbr.rel (0) target = $region33
    $region32: #{tpu_custom_call.1} parent=1 // pred_region
      _
    $region33: #{tpu_custom_call.1} parent=1 // pred_fallthru
      _
    // Predicated region
    $region34: #{tpu_custom_call.1} parent=1 // pred_check
      _
    $region35: #{tpu_custom_call.1} parent=1 // pred_check_branch
      %32 = sbr.rel (0) target = $region37
    $region36: #{tpu_custom_call.1} parent=1 // pred_region
      _
    $region37: #{tpu_custom_call.1} parent=1 // pred_fallthru
      _
    %v34 = vld [vmem:[%s0] sm:$0xff]
    %v35 = vld [vmem:[%s0 + $0x8] sm:$0xf]
    %v36 = vld [vmem:[%s1] sm:$0xff]
    %v37 = vld [vmem:[%s1 + $0x8] sm:$0xff]
    %v38 = vld [vmem:[%s1 + $0x10] sm:$0xff]
    %v39 = vld [vmem:[%s1 + $0x18] sm:$0xff]
    %v40 = vld [vmem:[%s2] sm:$0xff]
    %v41 = vld [vmem:[%s2 + $0x8] sm:$0xff]
    %v42 = vld [vmem:[%s2 + $0x10] sm:$0xff]
    %v43 = vld [vmem:[%s2 + $0x18] sm:$0xff]
    %v44 = vld [vmem:[%s3] sm:$0xff]
    %v45 = vld [vmem:[%s3 + $0x8] sm:$0xff]
    %v46 = vld [vmem:[%s3 + $0x10] sm:$0xff]
    %v47 = vld [vmem:[%s3 + $0x18] sm:$0xff]
    %v48 = vld [vmem:[%s4] sm:$0xff]
    %v49 = vld [vmem:[%s4 + $0x8] sm:$0xff]
    %v50 = vld [vmem:[%s4 + $0x10] sm:$0xff]
    %v51 = vld [vmem:[%s4 + $0x18] sm:$0xff]
    %v52 = vld [vmem:[%s5] sm:$0xff]
    %v53 = vld [vmem:[%s5 + $0x8] sm:$0xff]
    %v54 = vld [vmem:[%s5 + $0x10] sm:$0xff]
    %v55 = vld [vmem:[%s5 + $0x18] sm:$0xff]
    %v56 = vld [vmem:[%s6] sm:$0xff]
    %v57 = vld [vmem:[%s6 + $0x8] sm:$0xff]
    %v58 = vld [vmem:[%s6 + $0x10] sm:$0xff]
    %v59 = vld [vmem:[%s6 + $0x18] sm:$0xff]
    %v60 = vld [vmem:[%s7] sm:$0xff]
    %v61 = vld [vmem:[%s7 + $0x8] sm:$0xff]
    %v62 = vld [vmem:[%s7 + $0x10] sm:$0xff]
    %v63 = vld [vmem:[%s7 + $0x18] sm:$0xff]
    %v64 = vld [vmem:[%s8] sm:$0xff]
    %v65 = vld [vmem:[%s8 + $0x8] sm:$0xff]
    %v66 = vld [vmem:[%s8 + $0x10] sm:$0xff]
    %v67 = vld [vmem:[%s8 + $0x18] sm:$0xff]
    %v68 = vpack.c.bf16 %v37, %v36
    %v69 = vpack.c.bf16 %v39, %v38
    %v70 = vpack.c.bf16 %v35, %v34
    %vm71 = vcmask 97280
    %v73 = vsel %vm71, %v68, 0
    %v76 = vsel %vm71, %v69, 0
    %vm78 = vcmask 1045504
    %v80 = vsel %vm78, %v70, 0
    %82 = vmatprep.subr.bf16.mxu0 0
    %83 = vmatpush1.bf16.msra.mxu0 %v80
    %84 = vmatprep.subr.bf16.mxu0 0
    %85 = vmatpush1.bf16.msra.mxu0 0
    %86 = vmatprep.subr.bf16.mxu0 0
    %87 = vmatpush1.bf16.msra.mxu0 0
    %88 = vmatprep.subr.bf16.mxu0 0
    %89 = vmatpush1.bf16.msra.mxu0 0
    %90 = vmatprep.subr.bf16.mxu0 0
    %91 = vmatpush1.bf16.msra.mxu0 0
    %92 = vmatprep.subr.bf16.mxu0 0
    %93 = vmatpush1.bf16.msra.mxu0 0
    %94 = vmatprep.subr.bf16.mxu0 0
    %95 = vmatpush1.bf16.msra.mxu0 0
    %96 = vmatprep.subr.bf16.mxu0 0
    %97 = vmatpush1.bf16.msra.mxu0 0
    %98 = vmatprep.subr.bf16.mxu0 0
    %99 = vmatpush1.bf16.msra.mxu0 0
    %100 = vmatprep.subr.bf16.mxu0 0
    %101 = vmatpush1.bf16.msra.mxu0 0
    %102 = vmatprep.subr.bf16.mxu0 0
    %103 = vmatpush1.bf16.msra.mxu0 0
    %104 = vmatprep.subr.bf16.mxu0 0
    %105 = vmatpush1.bf16.msra.mxu0 0
    %106 = vmatprep.subr.bf16.mxu0 0
    %107 = vmatpush1.bf16.msra.mxu0 0
    %108 = vmatprep.subr.bf16.mxu0 0
    %109 = vmatpush1.bf16.msra.mxu0 0
    %110 = vmatprep.subr.bf16.mxu0 0
    %111 = vmatpush1.bf16.msra.mxu0 0
    %112 = vmatprep.subr.bf16.mxu0 0
    %113 = vmatpush1.bf16.msra.mxu0 0
    %114 = vmatprep.mubr.bf16.mxu0 0
    %115 = vmatmul.mubr.bf16.gmra.mrb[0].mxu0 %v73
    %v116 = vpop.f32.mrb[0].mxu0
    %v117 = vadd.f32 0.0, %v116
    %v118 = vpop.f32.mrb[0].mxu0
    %v119 = vpop.f32.mrb[0].mxu0
    %v120 = vadd.f32 0.0, %v119
    %v121 = vpop.f32.mrb[0].mxu0
    %122 = vmatprep.mubr.bf16.mxu0 0
    %123 = vmatmul.mubr.bf16.gmra.mrb[0].mxu0 %v76
    %v124 = vpop.f32.mrb[0].mxu0
    %v125 = vadd.f32 0.0, %v124
    %v126 = vpop.f32.mrb[0].mxu0
    %v127 = vpop.f32.mrb[0].mxu0
    %v128 = vadd.f32 0.0, %v127
    %v129 = vpop.f32.mrb[0].mxu0
    %130 = vdwg.mxu0
    %132 = vset.pattern.permute.xlu0 0
    %133 = vperm.xlu0 %132, %v40
    %v134 = vpop.permute.xlu0 %133
    %137 = vset.pattern.permute.xlu0 0
    %138 = vperm.xlu0 %137, %v41
    %v139 = vpop.permute.xlu0 %138
    %142 = vset.pattern.permute.xlu0 0
    %143 = vperm.xlu0 %142, %v42
    %v144 = vpop.permute.xlu0 %143
    %147 = vset.pattern.permute.xlu0 0
    %148 = vperm.xlu0 %147, %v43
    %v149 = vpop.permute.xlu0 %148
    %v151 = vadd.f32 %v134, %v117
    %v152 = vadd.f32 %v139, %v120
    %v153 = vadd.f32 %v144, %v125
    %v154 = vadd.f32 %v149, %v128
    %v155 = vxor.u32 %v151, 2147483648
    %v156 = vxor.u32 %v152, 2147483648
    %v157 = vxor.u32 %v153, 2147483648
    %v158 = vxor.u32 %v154, 2147483648
    %v159 = vmul.f32 %v155, 1.442695
    %v160 = vpow.pop %v159
    %v161 = vmul.f32 %v156, 1.442695
    %v162 = vpow.pop %v161
    %v163 = vmul.f32 %v157, 1.442695
    %v164 = vpow.pop %v163
    %v165 = vmul.f32 %v158, 1.442695
    %v166 = vpow.pop %v165
    %v167 = vadd.f32 %v160, 1.0
    %v168 = vadd.f32 %v162, 1.0
    %v169 = vadd.f32 %v164, 1.0
    %v170 = vadd.f32 %v166, 1.0
    %v171 = vrcp.pop %v167
    %v172 = vmul.f32 1.0, %v171
    %v173 = vrcp.pop %v168
    %v174 = vmul.f32 1.0, %v173
    %v175 = vrcp.pop %v169
    %v176 = vmul.f32 1.0, %v175
    %v177 = vrcp.pop %v170
    %v178 = vmul.f32 1.0, %v177
    %v179 = vmul.f32 %v151, %v172
    %v180 = vmul.f32 %v152, %v174
    %v181 = vmul.f32 %v153, %v176
    %v182 = vmul.f32 %v154, %v178
    %v183 = vpack.c.bf16 %v45, %v44
    %v184 = vpack.c.bf16 %v47, %v46
    %v185 = vpack.c.bf16 %v180, %v179
    %v186 = vpack.c.bf16 %v182, %v181
    %188 = vset.pattern.permute.xlu0 0
    %189 = vperm.xlu0 %188, %v48
    %v190 = vpop.permute.xlu0 %189
    %193 = vset.pattern.permute.xlu0 0
    %194 = vperm.xlu0 %193, %v49
    %v195 = vpop.permute.xlu0 %194
    %198 = vset.pattern.permute.xlu0 0
    %199 = vperm.xlu0 %198, %v50
    %v200 = vpop.permute.xlu0 %199
    %203 = vset.pattern.permute.xlu0 0
    %204 = vperm.xlu0 %203, %v51
    %v205 = vpop.permute.xlu0 %204
    %vm207 = vcmask 261120
    %v209 = vsel %vm207, %v183, 0
    %v212 = vsel %vm207, %v184, 0
    %214 = vmatprep.subr.bf16.mxu0 0
    %215 = vmatpush1.bf16.msra.mxu0 %v185
    %216 = vmatprep.subr.bf16.mxu0 0
    %217 = vmatpush1.bf16.msra.mxu0 %v186
    %218 = vmatprep.subr.bf16.mxu0 0
    %219 = vmatpush1.bf16.msra.mxu0 0
    %220 = vmatprep.subr.bf16.mxu0 0
    %221 = vmatpush1.bf16.msra.mxu0 0
    %222 = vmatprep.subr.bf16.mxu0 0
    %223 = vmatpush1.bf16.msra.mxu0 0
    %224 = vmatprep.subr.bf16.mxu0 0
    %225 = vmatpush1.bf16.msra.mxu0 0
    %226 = vmatprep.subr.bf16.mxu0 0
    %227 = vmatpush1.bf16.msra.mxu0 0
    %228 = vmatprep.subr.bf16.mxu0 0
    %229 = vmatpush1.bf16.msra.mxu0 0
    %230 = vmatprep.subr.bf16.mxu0 0
    %231 = vmatpush1.bf16.msra.mxu0 0
    %232 = vmatprep.subr.bf16.mxu0 0
    %233 = vmatpush1.bf16.msra.mxu0 0
    %234 = vmatprep.subr.bf16.mxu0 0
    %235 = vmatpush1.bf16.msra.mxu0 0
    %236 = vmatprep.subr.bf16.mxu0 0
    %237 = vmatpush1.bf16.msra.mxu0 0
    %238 = vmatprep.subr.bf16.mxu0 0
    %239 = vmatpush1.bf16.msra.mxu0 0
    %240 = vmatprep.subr.bf16.mxu0 0
    %241 = vmatpush1.bf16.msra.mxu0 0
    %242 = vmatprep.subr.bf16.mxu0 0
    %243 = vmatpush1.bf16.msra.mxu0 0
    %244 = vmatprep.subr.bf16.mxu0 0
    %245 = vmatpush1.bf16.msra.mxu0 0
    %246 = vmatprep.mubr.bf16.mxu0 0
    %247 = vmatmul.mubr.bf16.gmra.mrb[0].mxu0 %v209
    %v248 = vpop.f32.mrb[0].mxu0
    %v249 = vadd.f32 %v190, %v248
    %v250 = vpop.f32.mrb[0].mxu0
    %v251 = vpop.f32.mrb[0].mxu0
    %v252 = vadd.f32 %v195, %v251
    %v253 = vpop.f32.mrb[0].mxu0
    %254 = vmatprep.mubr.bf16.mxu0 0
    %255 = vmatmul.mubr.bf16.gmra.mrb[0].mxu0 %v212
    %v256 = vpop.f32.mrb[0].mxu0
    %v257 = vadd.f32 %v200, %v256
    %v258 = vpop.f32.mrb[0].mxu0
    %v259 = vpop.f32.mrb[0].mxu0
    %v260 = vadd.f32 %v205, %v259
    %v261 = vpop.f32.mrb[0].mxu0
    %262 = vdwg.mxu0
    %v263 = vxor.u32 %v249, 2147483648
    %v264 = vxor.u32 %v252, 2147483648
    %v265 = vxor.u32 %v257, 2147483648
    %v266 = vxor.u32 %v260, 2147483648
    %v267 = vmul.f32 %v263, 1.442695
    %v268 = vpow.pop %v267
    %v269 = vmul.f32 %v264, 1.442695
    %v270 = vpow.pop %v269
    %v271 = vmul.f32 %v265, 1.442695
    %v272 = vpow.pop %v271
    %v273 = vmul.f32 %v266, 1.442695
    %v274 = vpow.pop %v273
    %v275 = vadd.f32 %v268, 1.0
    %v276 = vadd.f32 %v270, 1.0
    %v277 = vadd.f32 %v272, 1.0
    %v278 = vadd.f32 %v274, 1.0
    %v279 = vrcp.pop %v275
    %v280 = vmul.f32 1.0, %v279
    %v281 = vrcp.pop %v276
    %v282 = vmul.f32 1.0, %v281
    %v283 = vrcp.pop %v277
    %v284 = vmul.f32 1.0, %v283
    %v285 = vrcp.pop %v278
    %v286 = vmul.f32 1.0, %v285
    %v287 = vmul.f32 %v249, %v280
    %v288 = vmul.f32 %v252, %v282
    %v289 = vmul.f32 %v257, %v284
    %v290 = vmul.f32 %v260, %v286
    %v291 = vpack.c.bf16 %v53, %v52
    %v292 = vpack.c.bf16 %v55, %v54
    %v293 = vpack.c.bf16 %v288, %v287
    %v294 = vpack.c.bf16 %v290, %v289
    %296 = vset.pattern.permute.xlu0 0
    %297 = vperm.xlu0 %296, %v56
    %v298 = vpop.permute.xlu0 %297
    %301 = vset.pattern.permute.xlu0 0
    %302 = vperm.xlu0 %301, %v57
    %v303 = vpop.permute.xlu0 %302
    %306 = vset.pattern.permute.xlu0 0
    %307 = vperm.xlu0 %306, %v58
    %v308 = vpop.permute.xlu0 %307
    %311 = vset.pattern.permute.xlu0 0
    %312 = vperm.xlu0 %311, %v59
    %v313 = vpop.permute.xlu0 %312
    %v316 = vsel %vm207, %v291, 0
    %v319 = vsel %vm207, %v292, 0
    %321 = vmatprep.subr.bf16.mxu0 0
    %322 = vmatpush1.bf16.msra.mxu0 %v293
    %323 = vmatprep.subr.bf16.mxu0 0
    %324 = vmatpush1.bf16.msra.mxu0 %v294
    %325 = vmatprep.subr.bf16.mxu0 0
    %326 = vmatpush1.bf16.msra.mxu0 0
    %327 = vmatprep.subr.bf16.mxu0 0
    %328 = vmatpush1.bf16.msra.mxu0 0
    %329 = vmatprep.subr.bf16.mxu0 0
    %330 = vmatpush1.bf16.msra.mxu0 0
    %331 = vmatprep.subr.bf16.mxu0 0
    %332 = vmatpush1.bf16.msra.mxu0 0
    %333 = vmatprep.subr.bf16.mxu0 0
    %334 = vmatpush1.bf16.msra.mxu0 0
    %335 = vmatprep.subr.bf16.mxu0 0
    %336 = vmatpush1.bf16.msra.mxu0 0
    %337 = vmatprep.subr.bf16.mxu0 0
    %338 = vmatpush1.bf16.msra.mxu0 0
    %339 = vmatprep.subr.bf16.mxu0 0
    %340 = vmatpush1.bf16.msra.mxu0 0
    %341 = vmatprep.subr.bf16.mxu0 0
    %342 = vmatpush1.bf16.msra.mxu0 0
    %343 = vmatprep.subr.bf16.mxu0 0
    %344 = vmatpush1.bf16.msra.mxu0 0
    %345 = vmatprep.subr.bf16.mxu0 0
    %346 = vmatpush1.bf16.msra.mxu0 0
    %347 = vmatprep.subr.bf16.mxu0 0
    %348 = vmatpush1.bf16.msra.mxu0 0
    %349 = vmatprep.subr.bf16.mxu0 0
    %350 = vmatpush1.bf16.msra.mxu0 0
    %351 = vmatprep.subr.bf16.mxu0 0
    %352 = vmatpush1.bf16.msra.mxu0 0
    %353 = vmatprep.mubr.bf16.mxu0 0
    %354 = vmatmul.mubr.bf16.gmra.mrb[0].mxu0 %v316
    %v355 = vpop.f32.mrb[0].mxu0
    %v356 = vadd.f32 %v298, %v355
    %v357 = vpop.f32.mrb[0].mxu0
    %v358 = vpop.f32.mrb[0].mxu0
    %v359 = vadd.f32 %v303, %v358
    %v360 = vpop.f32.mrb[0].mxu0
    %361 = vmatprep.mubr.bf16.mxu0 0
    %362 = vmatmul.mubr.bf16.gmra.mrb[0].mxu0 %v319
    %v363 = vpop.f32.mrb[0].mxu0
    %v364 = vadd.f32 %v308, %v363
    %v365 = vpop.f32.mrb[0].mxu0
    %v366 = vpop.f32.mrb[0].mxu0
    %v367 = vadd.f32 %v313, %v366
    %v368 = vpop.f32.mrb[0].mxu0
    %369 = vdwg.mxu0
    %v370 = vsel %vm207, %v356, 0.0
    %v371 = vsel %vm207, %v359, 0.0
    %v372 = vadd.f32 %v370, %v371
    %v373 = vsel %vm207, %v364, 0.0
    %v374 = vadd.f32 %v372, %v373
    %v375 = vsel %vm207, %v367, 0.0
    %v376 = vadd.f32 %v374, %v375
    %v377 = vrot.slane %v376, 4
    %v378 = vadd.f32 %v376, %v377
    %v379 = vrot.slane %v378, 2
    %v380 = vadd.f32 %v378, %v379
    %v381 = vrot.slane %v380, 1
    %v382 = vadd.f32 %v380, %v381
    %v383 = vrcp.pop 32.0
    %v384 = vmul.f32 %v382, %v383
    %v385 = vsub.f32 %v356, %v384
    %v386 = vsub.f32 %v359, %v384
    %v387 = vsub.f32 %v364, %v384
    %v388 = vsub.f32 %v367, %v384
    %v389 = vmul.f32 %v385, %v385
    %v390 = vmul.f32 %v386, %v386
    %v391 = vmul.f32 %v387, %v387
    %v392 = vmul.f32 %v388, %v388
    %v393 = vsel %vm207, %v389, 0.0
    %v394 = vsel %vm207, %v390, 0.0
    %v395 = vadd.f32 %v393, %v394
    %v396 = vsel %vm207, %v391, 0.0
    %v397 = vadd.f32 %v395, %v396
    %v398 = vsel %vm207, %v392, 0.0
    %v399 = vadd.f32 %v397, %v398
    %v400 = vrot.slane %v399, 4
    %v401 = vadd.f32 %v399, %v400
    %v402 = vrot.slane %v401, 2
    %v403 = vadd.f32 %v401, %v402
    %v404 = vrot.slane %v403, 1
    %v405 = vadd.f32 %v403, %v404
    %v406 = vmul.f32 %v405, %v383
    %v407 = vadd.f32 %v406, 1e-05
    %v408 = vrsqrt.pop %v407
    %v409 = vmul.f32 %v385, %v408
    %v410 = vmul.f32 %v386, %v408
    %v411 = vmul.f32 %v387, %v408
    %v412 = vmul.f32 %v388, %v408
    %414 = vset.pattern.permute.xlu0 0
    %415 = vperm.xlu0 %414, %v60
    %v416 = vpop.permute.xlu0 %415
    %419 = vset.pattern.permute.xlu0 0
    %420 = vperm.xlu0 %419, %v61
    %v421 = vpop.permute.xlu0 %420
    %424 = vset.pattern.permute.xlu0 0
    %425 = vperm.xlu0 %424, %v62
    %v426 = vpop.permute.xlu0 %425
    %429 = vset.pattern.permute.xlu0 0
    %430 = vperm.xlu0 %429, %v63
    %v431 = vpop.permute.xlu0 %430
    %v433 = vmul.f32 %v409, %v416
    %v434 = vmul.f32 %v410, %v421
    %v435 = vmul.f32 %v411, %v426
    %v436 = vmul.f32 %v412, %v431
    %438 = vset.pattern.permute.xlu0 0
    %439 = vperm.xlu0 %438, %v64
    %v440 = vpop.permute.xlu0 %439
    %443 = vset.pattern.permute.xlu0 0
    %444 = vperm.xlu0 %443, %v65
    %v445 = vpop.permute.xlu0 %444
    %448 = vset.pattern.permute.xlu0 0
    %449 = vperm.xlu0 %448, %v66
    %v450 = vpop.permute.xlu0 %449
    %453 = vset.pattern.permute.xlu0 0
    %454 = vperm.xlu0 %453, %v67
    %v455 = vpop.permute.xlu0 %454
    %v457 = vadd.f32 %v433, %v440
    %v458 = vadd.f32 %v434, %v445
    %v459 = vadd.f32 %v435, %v450
    %v460 = vadd.f32 %v436, %v455
    %v461 = vpack.c.bf16 %v458, %v457
    %v462 = vpack.c.bf16 %v460, %v459
    %v465 = vunpack.c.l.b16 %v461
    %v466 = vunpack.c.h.b16 %v461
    %v467 = vunpack.c.l.b16 %v462
    %v468 = vunpack.c.h.b16 %v462
    %v469 = vpack.c.b16 %v465, %v465
    %v470 = vpack.c.b16 %v466, %v466
    %v471 = vpack.c.b16 %v467, %v467
    %v472 = vpack.c.b16 %v468, %v468
    %vm477 = vcmask 257024
    %478 = vst.msk [vmem:[#allocation2] sm:$0xf] %vm477, %v469
    %479 = vst.msk [vmem:[#allocation2 + $0x4] sm:$0xf] %vm477, %v470
    %480 = vst.msk [vmem:[#allocation2 + $0x8] sm:$0xf] %vm477, %v471
    %481 = vst.msk [vmem:[#allocation2 + $0xc] sm:$0xf] %vm477, %v472
    // Predicated region
    $region38: #{tpu_custom_call.1} parent=1 // pred_check
      _
    $region39: #{tpu_custom_call.1} parent=1 // pred_check_branch
      %483 = sbr.rel (0) target = $region41
    $region40: #{tpu_custom_call.1} parent=1 // pred_region
      %s485 = ssub.s32 256, 256
      %486 = vsyncadd [#allocation3], %s485
      %s487 = sshll.u32 [#allocation2], 4
      %s488 = int_to_ptr.vmem [resolvable:$true] %s487
      %493 = dma.vmem_to_hbm [thread:$0]  %s488, 256, %s9, [#allocation3], 64, 64, 4
    $region41: #{tpu_custom_call.1} parent=1 // pred_fallthru
      _
    // Predicated region
    $region42: #{tpu_custom_call.1} parent=1 // pred_check
      _
    $region43: #{tpu_custom_call.1} parent=1 // pred_check_branch
      %495 = sbr.rel (0) target = $region45
    $region44: #{tpu_custom_call.1} parent=1 // pred_region
      %496 = dma.done [#allocation3], 256
    $region45: #{tpu_custom_call.1} parent=1 // pred_fallthru
      _
    %497 = vsyncpa [#allocation3], 1

</llo_original>
